<compile_context>
chip_gen: v7x
topology: tpu7x:2x2x1
jax: 0.10.0
libtpu: 0.0.40
codegen_flags: <defaults>
</compile_context>

<pallas_src>
import jax
import jax.numpy as jnp
from jax.experimental import pallas as pl
from jax.experimental.pallas import tpu as pltpu


def _round_up(x, m):
    return ((x + m - 1) // m) * m


def _siamese_kernel(ip_ref, in_ref, w1_ref, b1_ref, w2_ref, b2_ref,
                    op_ref, on_ref):
    # Weights/biases are full-array resident blocks; load once per tile.
    w1 = w1_ref[...]
    b1 = b1_ref[...]
    w2 = w2_ref[...]
    b2 = b2_ref[...]

    # Positive branch.
    h_p = jnp.maximum(
        jnp.dot(ip_ref[...], w1, preferred_element_type=jnp.float32) + b1, 0.0)
    op_ref[...] = jnp.dot(h_p, w2, preferred_element_type=jnp.float32) + b2

    # Negative branch (shared weights).
    h_n = jnp.maximum(
        jnp.dot(in_ref[...], w1, preferred_element_type=jnp.float32) + b1, 0.0)
    on_ref[...] = jnp.dot(h_n, w2, preferred_element_type=jnp.float32) + b2


def prepare_core_params(w1, b1, w2, b2):
    """One-time (setup) padding of core-model params to lane-dense layout.

    Only the OUTPUT dim H is padded (to Hp = multiple of 128) so stores are
    unmasked full-lane `vst`; the contraction dim L is left untouched.
    Zero-padded columns/rows are mathematically inert.
    """
    L, H = w1.shape
    Hp = _round_up(H, 128)
    w1_p = jnp.pad(w1, ((0, 0), (0, Hp - H)))
    b1_p = jnp.pad(jnp.reshape(b1, (1, -1)), ((0, 0), (0, Hp - H)))
    w2_p = jnp.pad(w2, ((0, Hp - H), (0, Hp - H)))
    b2_p = jnp.pad(jnp.reshape(b2, (1, -1)), ((0, 0), (0, Hp - H)))
    return (w1_p, b1_p, w2_p, b2_p), H


def siamese_forward(i_p, i_n, padded_params, hidden_size, *, block_rows=1024):
    """Returns (o_p, o_n), each (batch, hidden_size)."""
    w1_p, b1_p, w2_p, b2_p = padded_params
    B, L = i_p.shape
    Hp = w1_p.shape[1]
    H = hidden_size

    # ---- Row tiling: multiple of 8, VMEM-budgeted (v7x-safe), megacore. ----
    rows8 = _round_up(B, 8)

    VMEM_BUDGET_BYTES = 48 * 1024 * 1024        # safe on v7x (64 MiB physical)
    weight_bytes = (L * Hp + Hp * Hp + 2 * Hp) * 4
    # 2 input tiles + 2 output tiles, each double-buffered, f32.
    tile_row_bytes = 2 * 2 * (L + Hp) * 4
    bm_budget = max(8, ((VMEM_BUDGET_BYTES - weight_bytes)
                        // tile_row_bytes // 8) * 8)

    bm = min(block_rows, rows8, bm_budget)
    if rows8 >= 16:
        # Keep >= 2 grid steps so ("parallel",) can use both TCs on v7x.
        bm = min(bm, max(8, ((rows8 // 2) // 8) * 8))
    bm = max(8, (bm // 8) * 8)
    rows_p = _round_up(rows8, bm)
    grid = (rows_p // bm,)

    # ---- Row padding only (cheap; no-op when B is already a multiple). ----
    if rows_p != B:
        i_p_pad = jnp.pad(i_p, ((0, rows_p - B), (0, 0)))
        i_n_pad = jnp.pad(i_n, ((0, rows_p - B), (0, 0)))
    else:
        i_p_pad, i_n_pad = i_p, i_n

    # ---- Cost hint: 2 branches x (GEMM1 + GEMM2). ----
    flops = 2 * (2 * rows_p * L * Hp + 2 * rows_p * Hp * Hp)
    bytes_accessed = (2 * rows_p * L * 4          # i_p, i_n reads
                      + 2 * rows_p * Hp * 4       # o_p, o_n writes
                      + weight_bytes)             # resident weights
    cost = pl.CostEstimate(flops=flops, transcendentals=0,
                           bytes_accessed=bytes_accessed)

    out_p_pad, out_n_pad = pl.pallas_call(
        _siamese_kernel,
        out_shape=(
            jax.ShapeDtypeStruct((rows_p, Hp), jnp.float32),
            jax.ShapeDtypeStruct((rows_p, Hp), jnp.float32),
        ),
        grid=grid,
        in_specs=[
            pl.BlockSpec((bm, L), lambda i: (i, 0)),    # i_p tile (K unpadded)
            pl.BlockSpec((bm, L), lambda i: (i, 0)),    # i_n tile
            pl.BlockSpec((L, Hp), lambda i: (0, 0)),    # W1 (resident)
            pl.BlockSpec((1, Hp), lambda i: (0, 0)),    # b1 (resident)
            pl.BlockSpec((Hp, Hp), lambda i: (0, 0)),   # W2 (resident)
            pl.BlockSpec((1, Hp), lambda i: (0, 0)),    # b2 (resident)
        ],
        out_specs=(
            pl.BlockSpec((bm, Hp), lambda i: (i, 0)),   # o_p tile
            pl.BlockSpec((bm, Hp), lambda i: (i, 0)),   # o_n tile
        ),
        compiler_params=pltpu.CompilerParams(
            dimension_semantics=("parallel",),
            vmem_limit_bytes=VMEM_BUDGET_BYTES,
        ),
        cost_estimate=cost,
    )(i_p_pad, i_n_pad, w1_p, b1_p, w2_p, b2_p)

    return out_p_pad[:B, :H], out_n_pad[:B, :H]


def _init_params(key, max_word_len, hidden_size):
    """Deterministic PyTorch-Linear-style uniform init."""
    k1, k2, k3, k4 = jax.random.split(key, 4)
    lim1 = 1.0 / jnp.sqrt(max_word_len)
    lim2 = 1.0 / jnp.sqrt(hidden_size)
    w1 = jax.random.uniform(k1, (max_word_len, hidden_size),
                            jnp.float32, -lim1, lim1)
    b1 = jax.random.uniform(k2, (1, hidden_size), jnp.float32, -lim1, lim1)
    w2 = jax.random.uniform(k3, (hidden_size, hidden_size),
                            jnp.float32, -lim2, lim2)
    b2 = jax.random.uniform(k4, (1, hidden_size), jnp.float32, -lim2, lim2)
    return w1, b1, w2, b2


def _core_ref(x, w1, b1, w2, b2):
    h = jnp.maximum(x @ w1 + b1.reshape(1, -1), 0.0)
    return h @ w2 + b2.reshape(1, -1)


if __name__ == "__main__":
    # Shapes consistent with the module's docstrings:
    # i_p, i_n : (batch_size, max_word_len)
    batch_size, max_word_len, hidden_size = 8, 16, 32

    key = jax.random.PRNGKey(0)
    k_p, k_n, k_params = jax.random.split(key, 3)

    i_p = jax.random.normal(k_p, (batch_size, max_word_len), jnp.float32)
    i_n = jax.random.normal(k_n, (batch_size, max_word_len), jnp.float32)

    w1, b1, w2, b2 = _init_params(k_params, max_word_len, hidden_size)

    # Setup-time (hoisted) weight padding — not on the per-forward hot path.
    padded_params, H = prepare_core_params(w1, b1, w2, b2)

    o_p, o_n = siamese_forward(i_p, i_n, padded_params, H)
    jax.block_until_ready((o_p, o_n))

    # Correctness check against a plain-JAX reference of the same core model.
    ref_p = _core_ref(i_p, w1, b1, w2, b2)
    ref_n = _core_ref(i_n, w1, b1, w2, b2)
    assert o_p.shape == (batch_size, hidden_size)
    assert o_n.shape == (batch_size, hidden_size)
    assert jnp.allclose(o_p, ref_p, atol=1e-5, rtol=1e-5)
    assert jnp.allclose(o_n, ref_n, atol=1e-5, rtol=1e-5)

    # TODO(synk): triplet_loss uses torch.randperm (host RNG, training-only);
    # not part of forward(), so it is not implemented in the kernel.
    print("KERNEL_OK")
</pallas_src>

<mosaic_0001>
module attributes {stable_mosaic.version = 11 : i64} {
  func.func @_siamese_kernel(%arg0: i32, %arg1: memref<8x16xf32, #tpu.memory_space<vmem>>, %arg2: memref<8x16xf32, #tpu.memory_space<vmem>>, %arg3: memref<16x128xf32, #tpu.memory_space<vmem>>, %arg4: memref<1x128xf32, #tpu.memory_space<vmem>>, %arg5: memref<128x128xf32, #tpu.memory_space<vmem>>, %arg6: memref<1x128xf32, #tpu.memory_space<vmem>>, %arg7: memref<8x128xf32, #tpu.memory_space<vmem>>, %arg8: memref<8x128xf32, #tpu.memory_space<vmem>>) attributes {dimension_semantics = [#tpu.dimension_semantics<parallel>], iteration_bounds = array<i64: 1>, scalar_prefetch = 0 : i64, scratch_operands = 0 : i64, tpu.core_type = #tpu.core_type<tc>, window_params = [{transform_indices = @transform_0, window_bounds = array<i64: 8, 16>}, {transform_indices = @transform_1, window_bounds = array<i64: 8, 16>}, {pipeline_mode = #tpu.pipeline_mode<synchronous>, transform_indices = @transform_2, window_bounds = array<i64: 16, 128>}, {pipeline_mode = #tpu.pipeline_mode<synchronous>, transform_indices = @transform_3, window_bounds = array<i64: 1, 128>}, {pipeline_mode = #tpu.pipeline_mode<synchronous>, transform_indices = @transform_4, window_bounds = array<i64: 128, 128>}, {pipeline_mode = #tpu.pipeline_mode<synchronous>, transform_indices = @transform_5, window_bounds = array<i64: 1, 128>}, {transform_indices = @transform_6, window_bounds = array<i64: 8, 128>}, {transform_indices = @transform_7, window_bounds = array<i64: 8, 128>}]} {
    %c0 = arith.constant 0 : index
    %c0_0 = arith.constant 0 : index
    %0 = vector.load %arg3[%c0, %c0_0] : memref<16x128xf32, #tpu.memory_space<vmem>>, vector<16x128xf32>
    %c0_1 = arith.constant 0 : index
    %c0_2 = arith.constant 0 : index
    %1 = vector.load %arg4[%c0_1, %c0_2] : memref<1x128xf32, #tpu.memory_space<vmem>>, vector<1x128xf32>
    %c0_3 = arith.constant 0 : index
    %c0_4 = arith.constant 0 : index
    %2 = vector.load %arg5[%c0_3, %c0_4] : memref<128x128xf32, #tpu.memory_space<vmem>>, vector<128x128xf32>
    %c0_5 = arith.constant 0 : index
    %c0_6 = arith.constant 0 : index
    %3 = vector.load %arg6[%c0_5, %c0_6] : memref<1x128xf32, #tpu.memory_space<vmem>>, vector<1x128xf32>
    %c0_7 = arith.constant 0 : index
    %c0_8 = arith.constant 0 : index
    %4 = vector.load %arg1[%c0_7, %c0_8] : memref<8x16xf32, #tpu.memory_space<vmem>>, vector<8x16xf32>
    %cst = arith.constant dense<0.000000e+00> : vector<8x128xf32>
    %5 = tpu.matmul %4, %0, %cst {dimension_numbers = #tpu.dot_dimension_numbers<[1], [0], [0], [1], [0, 0, 1, 1], [], []>} : vector<8x16xf32>, vector<16x128xf32>, vector<8x128xf32> -> vector<8x128xf32>
    %6 = vector.broadcast %1 : vector<1x128xf32> to vector<8x128xf32>
    %7 = arith.addf %5, %6 : vector<8x128xf32>
    %cst_9 = arith.constant 0.000000e+00 : f32
    %8 = vector.broadcast %cst_9 : f32 to vector<8x128xf32>
    %9 = arith.maximumf %7, %8 : vector<8x128xf32>
    %cst_10 = arith.constant dense<0.000000e+00> : vector<8x128xf32>
    %10 = tpu.matmul %9, %2, %cst_10 {dimension_numbers = #tpu.dot_dimension_numbers<[1], [0], [0], [1], [0, 0, 1, 1], [], []>} : vector<8x128xf32>, vector<128x128xf32>, vector<8x128xf32> -> vector<8x128xf32>
    %11 = vector.broadcast %3 : vector<1x128xf32> to vector<8x128xf32>
    %12 = arith.addf %10, %11 : vector<8x128xf32>
    %c0_11 = arith.constant 0 : index
    %c0_12 = arith.constant 0 : index
    %13 = vector.load %arg7[%c0_11, %c0_12] : memref<8x128xf32, #tpu.memory_space<vmem>>, vector<8x128xf32>
    tpu.vector_store %arg7[%c0_11, %c0_12], %12 {strides = array<i32>} : memref<8x128xf32, #tpu.memory_space<vmem>>, vector<8x128xf32>,
    %c0_13 = arith.constant 0 : index
    %c0_14 = arith.constant 0 : index
    %14 = vector.load %arg2[%c0_13, %c0_14] : memref<8x16xf32, #tpu.memory_space<vmem>>, vector<8x16xf32>
    %cst_15 = arith.constant dense<0.000000e+00> : vector<8x128xf32>
    %15 = tpu.matmul %14, %0, %cst_15 {dimension_numbers = #tpu.dot_dimension_numbers<[1], [0], [0], [1], [0, 0, 1, 1], [], []>} : vector<8x16xf32>, vector<16x128xf32>, vector<8x128xf32> -> vector<8x128xf32>
    %16 = vector.broadcast %1 : vector<1x128xf32> to vector<8x128xf32>
    %17 = arith.addf %15, %16 : vector<8x128xf32>
    %cst_16 = arith.constant 0.000000e+00 : f32
    %18 = vector.broadcast %cst_16 : f32 to vector<8x128xf32>
    %19 = arith.maximumf %17, %18 : vector<8x128xf32>
    %cst_17 = arith.constant dense<0.000000e+00> : vector<8x128xf32>
    %20 = tpu.matmul %19, %2, %cst_17 {dimension_numbers = #tpu.dot_dimension_numbers<[1], [0], [0], [1], [0, 0, 1, 1], [], []>} : vector<8x128xf32>, vector<128x128xf32>, vector<8x128xf32> -> vector<8x128xf32>
    %21 = vector.broadcast %3 : vector<1x128xf32> to vector<8x128xf32>
    %22 = arith.addf %20, %21 : vector<8x128xf32>
    %c0_18 = arith.constant 0 : index
    %c0_19 = arith.constant 0 : index
    %23 = vector.load %arg8[%c0_18, %c0_19] : memref<8x128xf32, #tpu.memory_space<vmem>>, vector<8x128xf32>
    tpu.vector_store %arg8[%c0_18, %c0_19], %22 {strides = array<i32>} : memref<8x128xf32, #tpu.memory_space<vmem>>, vector<8x128xf32>,
    return
  }
  func.func @transform_0(%arg0: i32) -> (i32, i32) {
    %c0_i32 = arith.constant 0 : i32
    %c0_i32_0 = arith.constant 0 : i32
    return %arg0, %c0_i32 : i32, i32
  }
  func.func @transform_1(%arg0: i32) -> (i32, i32) {
    %c0_i32 = arith.constant 0 : i32
    %c0_i32_0 = arith.constant 0 : i32
    return %arg0, %c0_i32 : i32, i32
  }
  func.func @transform_2(%arg0: i32) -> (i32, i32) {
    %c0_i32 = arith.constant 0 : i32
    %c0_i32_0 = arith.constant 0 : i32
    %c0_i32_1 = arith.constant 0 : i32
    return %c0_i32, %c0_i32_0 : i32, i32
  }
  func.func @transform_3(%arg0: i32) -> (i32, i32) {
    %c0_i32 = arith.constant 0 : i32
    %c0_i32_0 = arith.constant 0 : i32
    %c0_i32_1 = arith.constant 0 : i32
    return %c0_i32, %c0_i32_0 : i32, i32
  }
  func.func @transform_4(%arg0: i32) -> (i32, i32) {
    %c0_i32 = arith.constant 0 : i32
    %c0_i32_0 = arith.constant 0 : i32
    %c0_i32_1 = arith.constant 0 : i32
    return %c0_i32, %c0_i32_0 : i32, i32
  }
  func.func @transform_5(%arg0: i32) -> (i32, i32) {
    %c0_i32 = arith.constant 0 : i32
    %c0_i32_0 = arith.constant 0 : i32
    %c0_i32_1 = arith.constant 0 : i32
    return %c0_i32, %c0_i32_0 : i32, i32
  }
  func.func @transform_6(%arg0: i32) -> (i32, i32) {
    %c0_i32 = arith.constant 0 : i32
    %c0_i32_0 = arith.constant 0 : i32
    return %arg0, %c0_i32 : i32, i32
  }
  func.func @transform_7(%arg0: i32) -> (i32, i32) {
    %c0_i32 = arith.constant 0 : i32
    %c0_i32_0 = arith.constant 0 : i32
    return %arg0, %c0_i32 : i32, i32
  }
}

</mosaic_0001>

<llo_original>
// kernel: tpu_custom_call.1
$region0: #{tpu_custom_call.1}
  #allocation0 [shape = 'u32[]', space=smem, size = 0x4, offset = 0x4, fixed_abs, tag = 'smem constant byte address 0x4 - core index']
  #allocation1 [shape = 'u32[144,128]{1,0:T(1,128)}', space=vmem, size = 0x12000, scoped, tag = 'internal scratch']
  %s0 = inlined_call_operand.hbm [shape: f32[8,16], index: 0, kind: input, shape index: {}]
  %s1 = inlined_call_operand.hbm [shape: f32[8,16], index: 1, kind: input, shape index: {}]
  %s2 = inlined_call_operand.hbm [shape: f32[16,128], index: 2, kind: input, shape index: {}]
  %s3 = inlined_call_operand.vmem [shape: f32[1,128], index: 3, kind: input, shape index: {}]
  %s4 = inlined_call_operand.hbm [shape: f32[128,128], index: 4, kind: input, shape index: {}]
  %s5 = inlined_call_operand.vmem [shape: f32[1,128], index: 5, kind: input, shape index: {}]
  %s6 = inlined_call_operand.hbm [shape: f32[8,128], index: 6, kind: output, shape index: {0}]
  %s7 = inlined_call_operand.hbm [shape: f32[8,128], index: 7, kind: output, shape index: {1}]
  %8 = xla_tuple %s6, %s7
  %s9 = sld [smem:[#allocation0]]
  $region58: #{tpu_custom_call.1} parent=0
    _
  %s11 = ssub.s32 1, %s9
  %s12 = scalar_select 0, %s11, %s9
  $region1: #{tpu_custom_call.1} parent=0
    #allocation2 [shape = 'u8[4096]{0}', space=vmem, size = 0x1000, scoped, tag = 'input window, operand 0, single buffered']
    #allocation3 [shape = 's32[1]{0}', space=sflag, size = 0x4, scoped, tag = 'scoped memory for tpu_custom_call.1']
    #allocation4 [shape = 's32[1]{0}', space=sflag, size = 0x4, scoped, tag = 'scoped memory for tpu_custom_call.1']
    #allocation5 [shape = 'u8[4096]{0}', space=vmem, size = 0x1000, scoped, tag = 'input window, operand 1, single buffered']
    #allocation6 [shape = 's32[1]{0}', space=sflag, size = 0x4, scoped, tag = 'scoped memory for tpu_custom_call.1']
    #allocation7 [shape = 'u8[8192]{0}', space=vmem, size = 0x2000, scoped, tag = 'input window, operand 2, single buffered']
    #allocation8 [shape = 'u8[65536]{0}', space=vmem, size = 0x10000, scoped, tag = 'input window, operand 4, single buffered']
    #allocation9 [shape = 's32[1]{0}', space=sflag, size = 0x4, scoped, tag = 'scoped memory for tpu_custom_call.1']
    #allocation10 [shape = 'u8[4096]{0}', space=vmem, size = 0x1000, scoped, tag = 'output window, operand 0, single buffered']
    #allocation11 [shape = 'u8[4096]{0}', space=vmem, size = 0x1000, scoped, tag = 'output window, operand 1, single buffered']
    #allocation12 [shape = 's32[1]{0}', space=sflag, size = 0x4, scoped, tag = 'scoped memory for tpu_custom_call.1']
    %13 = vsyncpa [#allocation3], 0
    %14 = vsyncpa [#allocation6], 0
    %15 = vsyncpa [#allocation9], 0
    %16 = vsyncpa [#allocation4], 0
    %17 = vsyncpa [#allocation12], 0
    // Predicated region
    $region2: #{tpu_custom_call.1} parent=1 // pred_check
      _
    $region3: #{tpu_custom_call.1} parent=1 // pred_check_branch
      %19 = sbr.rel (0) target = $region5
    $region4: #{tpu_custom_call.1} parent=1 // pred_region
      %s21 = ssub.s32 128, 128
      %22 = vsyncadd [#allocation3], %s21
      %s24 = sshll.u32 [#allocation2], 4
      %s25 = int_to_ptr.vmem [resolvable:$true] %s24
      %27 = dma.hbm_to_vmem [thread:$0]  %s0, 128, %s25, [#allocation3]
    $region5: #{tpu_custom_call.1} parent=1 // pred_fallthru
      _
    // Predicated region
    $region6: #{tpu_custom_call.1} parent=1 // pred_check
      _
    $region7: #{tpu_custom_call.1} parent=1 // pred_check_branch
      %29 = sbr.rel (0) target = $region9
    $region8: #{tpu_custom_call.1} parent=1 // pred_region
      %s31 = ssub.s32 128, 128
      %32 = vsyncadd [#allocation6], %s31
      %s34 = sshll.u32 [#allocation5], 4
      %s35 = int_to_ptr.vmem [resolvable:$true] %s34
      %37 = dma.hbm_to_vmem [thread:$0]  %s1, 128, %s35, [#allocation6]
    $region9: #{tpu_custom_call.1} parent=1 // pred_fallthru
      _
    // Predicated region
    $region10: #{tpu_custom_call.1} parent=1 // pred_check
      _
    $region11: #{tpu_custom_call.1} parent=1 // pred_check_branch
      %39 = sbr.rel (0) target = $region13
    $region12: #{tpu_custom_call.1} parent=1 // pred_region
      %s41 = ssub.s32 256, 256
      %42 = vsyncadd [#allocation6], %s41
      %s43 = sshll.u32 [#allocation7], 4
      %s44 = int_to_ptr.vmem [resolvable:$true] %s43
      %49 = dma.hbm_to_vmem [thread:$0]  %s2, 256, %s44, [#allocation6], 128, 128, 8
    $region13: #{tpu_custom_call.1} parent=1 // pred_fallthru
      _
    // Predicated region
    $region14: #{tpu_custom_call.1} parent=1 // pred_check
      _
    $region15: #{tpu_custom_call.1} parent=1 // pred_check_branch
      %51 = sbr.rel (0) target = $region17
    $region16: #{tpu_custom_call.1} parent=1 // pred_region
      _
    $region17: #{tpu_custom_call.1} parent=1 // pred_fallthru
      _
    // Predicated region
    $region18: #{tpu_custom_call.1} parent=1 // pred_check
      _
    $region19: #{tpu_custom_call.1} parent=1 // pred_check_branch
      %53 = sbr.rel (0) target = $region21
    $region20: #{tpu_custom_call.1} parent=1 // pred_region
      %s55 = ssub.s32 2048, 2048
      %56 = vsyncadd [#allocation9], %s55
      %s57 = sshll.u32 [#allocation8], 4
      %s58 = int_to_ptr.vmem [resolvable:$true] %s57
      %63 = dma.hbm_to_vmem [thread:$0]  %s4, 2048, %s58, [#allocation9], 128, 128, 8
    $region21: #{tpu_custom_call.1} parent=1 // pred_fallthru
      _
    // Predicated region
    $region22: #{tpu_custom_call.1} parent=1 // pred_check
      _
    $region23: #{tpu_custom_call.1} parent=1 // pred_check_branch
      %65 = sbr.rel (0) target = $region25
    $region24: #{tpu_custom_call.1} parent=1 // pred_region
      _
    $region25: #{tpu_custom_call.1} parent=1 // pred_fallthru
      _
    // Predicated region
    $region26: #{tpu_custom_call.1} parent=1 // pred_check
      _
    $region27: #{tpu_custom_call.1} parent=1 // pred_check_branch
      %67 = sbr.rel (0) target = $region29
    $region28: #{tpu_custom_call.1} parent=1 // pred_region
      %68 = dma.done [#allocation3], 128
    $region29: #{tpu_custom_call.1} parent=1 // pred_fallthru
      _
    // Predicated region
    $region30: #{tpu_custom_call.1} parent=1 // pred_check
      _
    $region31: #{tpu_custom_call.1} parent=1 // pred_check_branch
      %70 = sbr.rel (0) target = $region33
    $region32: #{tpu_custom_call.1} parent=1 // pred_region
      %71 = dma.done [#allocation6], 128
    $region33: #{tpu_custom_call.1} parent=1 // pred_fallthru
      _
    // Predicated region
    $region34: #{tpu_custom_call.1} parent=1 // pred_check
      _
    $region35: #{tpu_custom_call.1} parent=1 // pred_check_branch
      %73 = sbr.rel (0) target = $region37
    $region36: #{tpu_custom_call.1} parent=1 // pred_region
      %74 = dma.done [#allocation6], 256
    $region37: #{tpu_custom_call.1} parent=1 // pred_fallthru
      _
    // Predicated region
    $region38: #{tpu_custom_call.1} parent=1 // pred_check
      _
    $region39: #{tpu_custom_call.1} parent=1 // pred_check_branch
      %76 = sbr.rel (0) target = $region41
    $region40: #{tpu_custom_call.1} parent=1 // pred_region
      %77 = dma.done [#allocation9], 2048
    $region41: #{tpu_custom_call.1} parent=1 // pred_fallthru
      _
    %v78 = vld [vmem:[#allocation7] sm:$0xff]
    %v79 = vld [vmem:[#allocation7 + $0x8] sm:$0xff]
    %v80 = vld [vmem:[%s3] sm:$0x1]
    %v81 = vld [vmem:[#allocation8] sm:$0xff]
    %v82 = vld [vmem:[#allocation8 + $0x8] sm:$0xff]
    %v83 = vld [vmem:[#allocation8 + $0x10] sm:$0xff]
    %v84 = vld [vmem:[#allocation8 + $0x18] sm:$0xff]
    %v85 = vld [vmem:[#allocation8 + $0x20] sm:$0xff]
    %v86 = vld [vmem:[#allocation8 + $0x28] sm:$0xff]
    %v87 = vld [vmem:[#allocation8 + $0x30] sm:$0xff]
    %v88 = vld [vmem:[#allocation8 + $0x38] sm:$0xff]
    %v89 = vld [vmem:[#allocation8 + $0x40] sm:$0xff]
    %v90 = vld [vmem:[#allocation8 + $0x48] sm:$0xff]
    %v91 = vld [vmem:[#allocation8 + $0x50] sm:$0xff]
    %v92 = vld [vmem:[#allocation8 + $0x58] sm:$0xff]
    %v93 = vld [vmem:[#allocation8 + $0x60] sm:$0xff]
    %v94 = vld [vmem:[#allocation8 + $0x68] sm:$0xff]
    %v95 = vld [vmem:[#allocation8 + $0x70] sm:$0xff]
    %v96 = vld [vmem:[#allocation8 + $0x78] sm:$0xff]
    %v97 = vld [vmem:[%s5] sm:$0x1]
    %v98 = vld [vmem:[#allocation2] sm:$0xff]
    %v100 = vlaneseq
    %v101 = vshrl.u32 %v100, 7
    %v102 = vsub.s32 0, %v101
    %v103 = vrot.slane %v80, %v102
    %vm105 = vcmask 130048
    %v107 = vsel %vm105, %v98, 0
    %109 = vmatprep.subr.mxu0 0.0
    %110 = vmatpush1.msra.mxu0 %v78
    %111 = vmatprep.subr.mxu0 0.0
    %112 = vmatpush1.msra.mxu0 %v79
    %113 = vmatprep.subr.mxu0 0.0
    %114 = vmatpush1.msra.mxu0 0.0
    %115 = vmatprep.subr.mxu0 0.0
    %116 = vmatpush1.msra.mxu0 0.0
    %117 = vmatprep.subr.mxu0 0.0
    %118 = vmatpush1.msra.mxu0 0.0
    %119 = vmatprep.subr.mxu0 0.0
    %120 = vmatpush1.msra.mxu0 0.0
    %121 = vmatprep.subr.mxu0 0.0
    %122 = vmatpush1.msra.mxu0 0.0
    %123 = vmatprep.subr.mxu0 0.0
    %124 = vmatpush1.msra.mxu0 0.0
    %125 = vmatprep.subr.mxu0 0.0
    %126 = vmatpush1.msra.mxu0 0.0
    %127 = vmatprep.subr.mxu0 0.0
    %128 = vmatpush1.msra.mxu0 0.0
    %129 = vmatprep.subr.mxu0 0.0
    %130 = vmatpush1.msra.mxu0 0.0
    %131 = vmatprep.subr.mxu0 0.0
    %132 = vmatpush1.msra.mxu0 0.0
    %133 = vmatprep.subr.mxu0 0.0
    %134 = vmatpush1.msra.mxu0 0.0
    %135 = vmatprep.subr.mxu0 0.0
    %136 = vmatpush1.msra.mxu0 0.0
    %137 = vmatprep.subr.mxu0 0.0
    %138 = vmatpush1.msra.mxu0 0.0
    %139 = vmatprep.subr.mxu0 0.0
    %140 = vmatpush1.msra.mxu0 0.0
    %141 = vmatprep.subr.mxu0 0.0
    %142 = vmatpush1.msra.mxu0 0.0
    %143 = vmatprep.subr.mxu0 0.0
    %144 = vmatpush1.msra.mxu0 0.0
    %145 = vmatprep.subr.mxu0 0.0
    %146 = vmatpush1.msra.mxu0 0.0
    %147 = vmatprep.subr.mxu0 0.0
    %148 = vmatpush1.msra.mxu0 0.0
    %149 = vmatprep.subr.mxu0 0.0
    %150 = vmatpush1.msra.mxu0 0.0
    %151 = vmatprep.subr.mxu0 0.0
    %152 = vmatpush1.msra.mxu0 0.0
    %153 = vmatprep.subr.mxu0 0.0
    %154 = vmatpush1.msra.mxu0 0.0
    %155 = vmatprep.subr.mxu0 0.0
    %156 = vmatpush1.msra.mxu0 0.0
    %157 = vmatprep.subr.mxu0 0.0
    %158 = vmatpush1.msra.mxu0 0.0
    %159 = vmatprep.subr.mxu0 0.0
    %160 = vmatpush1.msra.mxu0 0.0
    %161 = vmatprep.subr.mxu0 0.0
    %162 = vmatpush1.msra.mxu0 0.0
    %163 = vmatprep.subr.mxu0 0.0
    %164 = vmatpush1.msra.mxu0 0.0
    %165 = vmatprep.subr.mxu0 0.0
    %166 = vmatpush1.msra.mxu0 0.0
    %167 = vmatprep.subr.mxu0 0.0
    %168 = vmatpush1.msra.mxu0 0.0
    %169 = vmatprep.subr.mxu0 0.0
    %170 = vmatpush1.msra.mxu0 0.0
    %171 = vmatprep.subr.mxu0 0.0
    %172 = vmatpush1.msra.mxu0 0.0
    %173 = vmatprep.mubr.f32.mxu0 0.0
    %174 = vmatmul.mubr.f32.gmra.mrb[0].mxu0 %v107
    %v175 = vpop.f32.mrb[0].mxu0
    %v176 = vadd.f32 %v103, %v175
    %v177 = vpop.f32.mrb[0].mxu0
    %178 = vdwg.mxu0
    %v179 = vmax.f32 %v176, 0.0
    %v181 = vlaneseq
    %v182 = vshrl.u32 %v181, 7
    %v183 = vsub.s32 0, %v182
    %v184 = vrot.slane %v97, %v183
    %186 = vmatprep.subr.mxu0 0.0
    %187 = vmatpush1.msra.mxu0 %v81
    %188 = vmatprep.subr.mxu0 0.0
    %189 = vmatpush1.msra.mxu0 %v82
    %190 = vmatprep.subr.mxu0 0.0
    %191 = vmatpush1.msra.mxu0 %v83
    %192 = vmatprep.subr.mxu0 0.0
    %193 = vmatpush1.msra.mxu0 %v84
    %194 = vmatprep.subr.mxu0 0.0
    %195 = vmatpush1.msra.mxu0 %v85
    %196 = vmatprep.subr.mxu0 0.0
    %197 = vmatpush1.msra.mxu0 %v86
    %198 = vmatprep.subr.mxu0 0.0
    %199 = vmatpush1.msra.mxu0 %v87
    %200 = vmatprep.subr.mxu0 0.0
    %201 = vmatpush1.msra.mxu0 %v88
    %202 = vmatprep.subr.mxu0 0.0
    %203 = vmatpush1.msra.mxu0 %v89
    %204 = vmatprep.subr.mxu0 0.0
    %205 = vmatpush1.msra.mxu0 %v90
    %206 = vmatprep.subr.mxu0 0.0
    %207 = vmatpush1.msra.mxu0 %v91
    %208 = vmatprep.subr.mxu0 0.0
    %209 = vmatpush1.msra.mxu0 %v92
    %210 = vmatprep.subr.mxu0 0.0
    %211 = vmatpush1.msra.mxu0 %v93
    %212 = vmatprep.subr.mxu0 0.0
    %213 = vmatpush1.msra.mxu0 %v94
    %214 = vmatprep.subr.mxu0 0.0
    %215 = vmatpush1.msra.mxu0 %v95
    %216 = vmatprep.subr.mxu0 0.0
    %217 = vmatpush1.msra.mxu0 %v96
    %218 = vmatprep.subr.mxu0 0.0
    %219 = vmatpush1.msra.mxu0 0.0
    %220 = vmatprep.subr.mxu0 0.0
    %221 = vmatpush1.msra.mxu0 0.0
    %222 = vmatprep.subr.mxu0 0.0
    %223 = vmatpush1.msra.mxu0 0.0
    %224 = vmatprep.subr.mxu0 0.0
    %225 = vmatpush1.msra.mxu0 0.0
    %226 = vmatprep.subr.mxu0 0.0
    %227 = vmatpush1.msra.mxu0 0.0
    %228 = vmatprep.subr.mxu0 0.0
    %229 = vmatpush1.msra.mxu0 0.0
    %230 = vmatprep.subr.mxu0 0.0
    %231 = vmatpush1.msra.mxu0 0.0
    %232 = vmatprep.subr.mxu0 0.0
    %233 = vmatpush1.msra.mxu0 0.0
    %234 = vmatprep.subr.mxu0 0.0
    %235 = vmatpush1.msra.mxu0 0.0
    %236 = vmatprep.subr.mxu0 0.0
    %237 = vmatpush1.msra.mxu0 0.0
    %238 = vmatprep.subr.mxu0 0.0
    %239 = vmatpush1.msra.mxu0 0.0
    %240 = vmatprep.subr.mxu0 0.0
    %241 = vmatpush1.msra.mxu0 0.0
    %242 = vmatprep.subr.mxu0 0.0
    %243 = vmatpush1.msra.mxu0 0.0
    %244 = vmatprep.subr.mxu0 0.0
    %245 = vmatpush1.msra.mxu0 0.0
    %246 = vmatprep.subr.mxu0 0.0
    %247 = vmatpush1.msra.mxu0 0.0
    %248 = vmatprep.subr.mxu0 0.0
    %249 = vmatpush1.msra.mxu0 0.0
    %250 = vmatprep.mubr.f32.mxu0 0.0
    %251 = vmatmul.mubr.f32.gmra.mrb[0].mxu0 %v179
    %v252 = vpop.f32.mrb[0].mxu0
    %v253 = vadd.f32 %v184, %v252
    %v254 = vpop.f32.mrb[0].mxu0
    %255 = vdwg.mxu0
    %256 = vst [vmem:[#allocation10] sm:$0xff] %v253
    %v257 = vld [vmem:[#allocation5] sm:$0xff]
    %v259 = vsel %vm105, %v257, 0
    %261 = vmatprep.subr.mxu0 0.0
    %262 = vmatpush1.msra.mxu0 %v78
    %263 = vmatprep.subr.mxu0 0.0
    %264 = vmatpush1.msra.mxu0 %v79
    %265 = vmatprep.subr.mxu0 0.0
    %266 = vmatpush1.msra.mxu0 0.0
    %267 = vmatprep.subr.mxu0 0.0
    %268 = vmatpush1.msra.mxu0 0.0
    %269 = vmatprep.subr.mxu0 0.0
    %270 = vmatpush1.msra.mxu0 0.0
    %271 = vmatprep.subr.mxu0 0.0
    %272 = vmatpush1.msra.mxu0 0.0
    %273 = vmatprep.subr.mxu0 0.0
    %274 = vmatpush1.msra.mxu0 0.0
    %275 = vmatprep.subr.mxu0 0.0
    %276 = vmatpush1.msra.mxu0 0.0
    %277 = vmatprep.subr.mxu0 0.0
    %278 = vmatpush1.msra.mxu0 0.0
    %279 = vmatprep.subr.mxu0 0.0
    %280 = vmatpush1.msra.mxu0 0.0
    %281 = vmatprep.subr.mxu0 0.0
    %282 = vmatpush1.msra.mxu0 0.0
    %283 = vmatprep.subr.mxu0 0.0
    %284 = vmatpush1.msra.mxu0 0.0
    %285 = vmatprep.subr.mxu0 0.0
    %286 = vmatpush1.msra.mxu0 0.0
    %287 = vmatprep.subr.mxu0 0.0
    %288 = vmatpush1.msra.mxu0 0.0
    %289 = vmatprep.subr.mxu0 0.0
    %290 = vmatpush1.msra.mxu0 0.0
    %291 = vmatprep.subr.mxu0 0.0
    %292 = vmatpush1.msra.mxu0 0.0
    %293 = vmatprep.subr.mxu0 0.0
    %294 = vmatpush1.msra.mxu0 0.0
    %295 = vmatprep.subr.mxu0 0.0
    %296 = vmatpush1.msra.mxu0 0.0
    %297 = vmatprep.subr.mxu0 0.0
    %298 = vmatpush1.msra.mxu0 0.0
    %299 = vmatprep.subr.mxu0 0.0
    %300 = vmatpush1.msra.mxu0 0.0
    %301 = vmatprep.subr.mxu0 0.0
    %302 = vmatpush1.msra.mxu0 0.0
    %303 = vmatprep.subr.mxu0 0.0
    %304 = vmatpush1.msra.mxu0 0.0
    %305 = vmatprep.subr.mxu0 0.0
    %306 = vmatpush1.msra.mxu0 0.0
    %307 = vmatprep.subr.mxu0 0.0
    %308 = vmatpush1.msra.mxu0 0.0
    %309 = vmatprep.subr.mxu0 0.0
    %310 = vmatpush1.msra.mxu0 0.0
    %311 = vmatprep.subr.mxu0 0.0
    %312 = vmatpush1.msra.mxu0 0.0
    %313 = vmatprep.subr.mxu0 0.0
    %314 = vmatpush1.msra.mxu0 0.0
    %315 = vmatprep.subr.mxu0 0.0
    %316 = vmatpush1.msra.mxu0 0.0
    %317 = vmatprep.subr.mxu0 0.0
    %318 = vmatpush1.msra.mxu0 0.0
    %319 = vmatprep.subr.mxu0 0.0
    %320 = vmatpush1.msra.mxu0 0.0
    %321 = vmatprep.subr.mxu0 0.0
    %322 = vmatpush1.msra.mxu0 0.0
    %323 = vmatprep.subr.mxu0 0.0
    %324 = vmatpush1.msra.mxu0 0.0
    %325 = vmatprep.mubr.f32.mxu0 0.0
    %326 = vmatmul.mubr.f32.gmra.mrb[0].mxu0 %v259
    %v327 = vpop.f32.mrb[0].mxu0
    %v328 = vadd.f32 %v103, %v327
    %v329 = vpop.f32.mrb[0].mxu0
    %330 = vdwg.mxu0
    %v331 = vmax.f32 %v328, 0.0
    %332 = vmatprep.subr.mxu0 0.0
    %333 = vmatpush1.msra.mxu0 %v81
    %334 = vmatprep.subr.mxu0 0.0
    %335 = vmatpush1.msra.mxu0 %v82
    %336 = vmatprep.subr.mxu0 0.0
    %337 = vmatpush1.msra.mxu0 %v83
    %338 = vmatprep.subr.mxu0 0.0
    %339 = vmatpush1.msra.mxu0 %v84
    %340 = vmatprep.subr.mxu0 0.0
    %341 = vmatpush1.msra.mxu0 %v85
    %342 = vmatprep.subr.mxu0 0.0
    %343 = vmatpush1.msra.mxu0 %v86
    %344 = vmatprep.subr.mxu0 0.0
    %345 = vmatpush1.msra.mxu0 %v87
    %346 = vmatprep.subr.mxu0 0.0
    %347 = vmatpush1.msra.mxu0 %v88
    %348 = vmatprep.subr.mxu0 0.0
    %349 = vmatpush1.msra.mxu0 %v89
    %350 = vmatprep.subr.mxu0 0.0
    %351 = vmatpush1.msra.mxu0 %v90
    %352 = vmatprep.subr.mxu0 0.0
    %353 = vmatpush1.msra.mxu0 %v91
    %354 = vmatprep.subr.mxu0 0.0
    %355 = vmatpush1.msra.mxu0 %v92
    %356 = vmatprep.subr.mxu0 0.0
    %357 = vmatpush1.msra.mxu0 %v93
    %358 = vmatprep.subr.mxu0 0.0
    %359 = vmatpush1.msra.mxu0 %v94
    %360 = vmatprep.subr.mxu0 0.0
    %361 = vmatpush1.msra.mxu0 %v95
    %362 = vmatprep.subr.mxu0 0.0
    %363 = vmatpush1.msra.mxu0 %v96
    %364 = vmatprep.subr.mxu0 0.0
    %365 = vmatpush1.msra.mxu0 0.0
    %366 = vmatprep.subr.mxu0 0.0
    %367 = vmatpush1.msra.mxu0 0.0
    %368 = vmatprep.subr.mxu0 0.0
    %369 = vmatpush1.msra.mxu0 0.0
    %370 = vmatprep.subr.mxu0 0.0
    %371 = vmatpush1.msra.mxu0 0.0
    %372 = vmatprep.subr.mxu0 0.0
    %373 = vmatpush1.msra.mxu0 0.0
    %374 = vmatprep.subr.mxu0 0.0
    %375 = vmatpush1.msra.mxu0 0.0
    %376 = vmatprep.subr.mxu0 0.0
    %377 = vmatpush1.msra.mxu0 0.0
    %378 = vmatprep.subr.mxu0 0.0
    %379 = vmatpush1.msra.mxu0 0.0
    %380 = vmatprep.subr.mxu0 0.0
    %381 = vmatpush1.msra.mxu0 0.0
    %382 = vmatprep.subr.mxu0 0.0
    %383 = vmatpush1.msra.mxu0 0.0
    %384 = vmatprep.subr.mxu0 0.0
    %385 = vmatpush1.msra.mxu0 0.0
    %386 = vmatprep.subr.mxu0 0.0
    %387 = vmatpush1.msra.mxu0 0.0
    %388 = vmatprep.subr.mxu0 0.0
    %389 = vmatpush1.msra.mxu0 0.0
    %390 = vmatprep.subr.mxu0 0.0
    %391 = vmatpush1.msra.mxu0 0.0
    %392 = vmatprep.subr.mxu0 0.0
    %393 = vmatpush1.msra.mxu0 0.0
    %394 = vmatprep.subr.mxu0 0.0
    %395 = vmatpush1.msra.mxu0 0.0
    %396 = vmatprep.mubr.f32.mxu0 0.0
    %397 = vmatmul.mubr.f32.gmra.mrb[0].mxu0 %v331
    %v398 = vpop.f32.mrb[0].mxu0
    %v399 = vadd.f32 %v184, %v398
    %v400 = vpop.f32.mrb[0].mxu0
    %401 = vdwg.mxu0
    %402 = vst [vmem:[#allocation11] sm:$0xff] %v399
    // Predicated region
    $region42: #{tpu_custom_call.1} parent=1 // pred_check
      _
    $region43: #{tpu_custom_call.1} parent=1 // pred_check_branch
      %404 = sbr.rel (0) target = $region45
    $region44: #{tpu_custom_call.1} parent=1 // pred_region
      %s406 = ssub.s32 128, 128
      %407 = vsyncadd [#allocation4], %s406
      %s409 = sshll.u32 [#allocation10], 4
      %s410 = int_to_ptr.vmem [resolvable:$true] %s409
      %412 = dma.vmem_to_hbm [thread:$0]  %s410, 128, %s6, [#allocation4]
    $region45: #{tpu_custom_call.1} parent=1 // pred_fallthru
      _
    // Predicated region
    $region46: #{tpu_custom_call.1} parent=1 // pred_check
      _
    $region47: #{tpu_custom_call.1} parent=1 // pred_check_branch
      %414 = sbr.rel (0) target = $region49
    $region48: #{tpu_custom_call.1} parent=1 // pred_region
      %s416 = ssub.s32 128, 128
      %417 = vsyncadd [#allocation12], %s416
      %s419 = sshll.u32 [#allocation11], 4
      %s420 = int_to_ptr.vmem [resolvable:$true] %s419
      %422 = dma.vmem_to_hbm [thread:$0]  %s420, 128, %s7, [#allocation12]
    $region49: #{tpu_custom_call.1} parent=1 // pred_fallthru
      _
    // Predicated region
    $region50: #{tpu_custom_call.1} parent=1 // pred_check
      _
    $region51: #{tpu_custom_call.1} parent=1 // pred_check_branch
      %424 = sbr.rel (0) target = $region53
    $region52: #{tpu_custom_call.1} parent=1 // pred_region
      %425 = dma.done [#allocation4], 128
    $region53: #{tpu_custom_call.1} parent=1 // pred_fallthru
      _
    // Predicated region
    $region54: #{tpu_custom_call.1} parent=1 // pred_check
      _
    $region55: #{tpu_custom_call.1} parent=1 // pred_check_branch
      %427 = sbr.rel (0) target = $region57
    $region56: #{tpu_custom_call.1} parent=1 // pred_region
      %428 = dma.done [#allocation12], 128
    $region57: #{tpu_custom_call.1} parent=1 // pred_fallthru
      _
    %429 = vsyncpa [#allocation3], 1
    %430 = vsyncpa [#allocation6], 1
    %431 = vsyncpa [#allocation9], 1
    %432 = vsyncpa [#allocation4], 1
    %433 = vsyncpa [#allocation12], 1

</llo_original>
